<compile_context>
chip_gen: v5e
topology: v5e:2x2
jax: 0.10.0
libtpu: 0.0.40
codegen_flags: <defaults>
</compile_context>

<pallas_src>
import jax
import jax.numpy as jnp
from jax.experimental import pallas as pl
from jax.experimental.pallas import tpu as pltpu


def _round_up(a, b):
    return (a + b - 1) // b * b


def _cdiv(a, b):
    return (a + b - 1) // b


def _vmem_capacity_bytes():
    """Per-core VMEM capacity; conservative 64 MiB fallback (v7x per-TC)."""
    try:
        cap = getattr(pltpu.get_tpu_info(), "vmem_capacity_bytes", None)
        if cap:
            return int(cap)
    except Exception:
        pass
    return 64 * 1024 * 1024


# ------------------------------ kernels --------------------------------------


def _gram_kernel(x_ref, g_ref, o_ref):
    # y = x @ G, with G = W^T W VMEM-resident across grid steps.
    # x arrives in its native (HBM) dtype; cast to the MXU dtype here.
    x = x_ref[...].astype(g_ref.dtype)
    y = jnp.dot(x, g_ref[...], preferred_element_type=jnp.float32)
    o_ref[...] = y.astype(o_ref.dtype)


def _two_matmul_kernel(x_ref, w_ref, o_ref):
    # y = (x @ W^T) @ W with W VMEM-resident.  The intermediate t stays in f32
    # (no double bf16 rounding).
    x = x_ref[...].astype(w_ref.dtype)
    w = w_ref[...]
    t = jax.lax.dot_general(
        x, w,
        dimension_numbers=(((1,), (1,)), ((), ())),
        preferred_element_type=jnp.float32,
    )
    y = jnp.dot(t, w.astype(jnp.float32), preferred_element_type=jnp.float32)
    o_ref[...] = y.astype(o_ref.dtype)


# ------------------------------ wrapper --------------------------------------


def bear_wwty(x, w, *, tm_cap=2048, compute_dtype=jnp.bfloat16,
              use_gram=None, allow_fallback=True):
    """Compute (x @ w.T) @ w with a batch-tiled Pallas TPU kernel.

    x: (..., inp), w: (k, inp).  Returns an array of shape x.shape, dtype x.dtype.
    """
    orig_shape = x.shape
    inp = orig_shape[-1]
    k, inp_w = w.shape
    assert inp == inp_w, "last dim of x must match W's input dim"

    x2 = x.reshape(-1, inp)
    B = x2.shape[0]

    # Tiny problems: pallas_call fixed overhead dwarfs the work; let XLA fuse it.
    if allow_fallback and B * inp <= 16 * 1024:
        return ((x2 @ w.T) @ w).astype(x.dtype).reshape(orig_shape)

    cbytes = jnp.dtype(compute_dtype).itemsize
    xbytes = jnp.dtype(x.dtype).itemsize
    obytes = xbytes

    # Gram path (single full-lane-width MXU pass per tile) whenever inp is small
    # enough that ceil(inp/256)^2 passes beat two k-limited passes, or W itself
    # is larger than G.
    if use_gram is None:
        use_gram = (inp <= 512) or (k >= inp)

    resident_elems = inp * inp if use_gram else k * inp
    flops_per_row = 2 * inp * inp if use_gram else 4 * inp * k

    # ---- generation-aware VMEM budget ----
    vmem_cap = _vmem_capacity_bytes()
    budget = min(int(vmem_cap * 0.55), 80 * 1024 * 1024)
    vmem_limit = max(32 * 1024 * 1024,
                     min(int(vmem_cap * 0.75), 96 * 1024 * 1024))

    resident_bytes = 2 * resident_elems * cbytes  # constant-index block, 2 buffers
    if resident_bytes > budget // 2:
        # TODO(synk): add inp/k tiling for the case where W (or W^T W) alone
        # overflows VMEM; fall back to plain XLA there for now.
        return ((x2 @ w.T) @ w).astype(x.dtype).reshape(orig_shape)

    # Per batch row: x + out blocks (double-buffered, HBM dtypes) plus the
    # in-kernel compute-dtype copy of x and the f32 accumulator.
    per_row = inp * (2 * xbytes + 2 * obytes + cbytes + 4)
    if not use_gram:
        per_row += k * 4  # (TM, k) f32 intermediate
    tm_vmem = max(16, ((budget - resident_bytes) // per_row) // 16 * 16)
    cap = max(16, min(int(tm_cap), tm_vmem))

    # Balanced batch tiles; >= 2 grid steps for v7x's two TensorCores when the
    # batch is large enough to split.
    min_tiles = 2 if B >= 256 else 1
    n_tiles = max(_cdiv(B, cap), min_tiles)
    TM = _round_up(_cdiv(B, n_tiles), 16)
    B_p = _round_up(B, TM)
    grid = (B_p // TM,)

    xp = x2 if B_p == B else jnp.pad(x2, ((0, B_p - B), (0, 0)))

    if use_gram:
        w32 = w.astype(jnp.float32)
        resident_in = (w32.T @ w32).astype(compute_dtype)      # (inp, inp), tiny
        resident_spec = pl.BlockSpec((inp, inp), lambda i: (0, 0))
        kernel = _gram_kernel
    else:
        resident_in = w.astype(compute_dtype)                   # (k, inp), tiny
        resident_spec = pl.BlockSpec((k, inp), lambda i: (0, 0))
        kernel = _two_matmul_kernel

    cost = pl.CostEstimate(
        flops=int(flops_per_row) * int(B_p),
        transcendentals=0,
        bytes_accessed=int(B_p * inp * (xbytes + obytes)
                           + resident_elems * cbytes),
    )

    out_p = pl.pallas_call(
        kernel,
        out_shape=jax.ShapeDtypeStruct((B_p, inp), x.dtype),
        grid=grid,
        in_specs=[
            pl.BlockSpec((TM, inp), lambda i: (i, 0)),   # x marches over batch rows
            resident_spec,                               # W or G: VMEM-resident
        ],
        out_specs=pl.BlockSpec((TM, inp), lambda i: (i, 0)),
        compiler_params=pltpu.CompilerParams(
            dimension_semantics=("parallel",),           # shards grid across TCs on v7x
            vmem_limit_bytes=vmem_limit,
        ),
        cost_estimate=cost,
    )(xp, resident_in)

    out = out_p if B_p == B else out_p[:B]
    return out.reshape(orig_shape)


if __name__ == "__main__":
    key = jax.random.PRNGKey(0)
    kx, kw, kb = jax.random.split(key, 3)

    batch, inp, k = 8, 32, 4  # small shapes consistent with the module

    x = jax.random.normal(kx, (batch, inp), dtype=jnp.float32)
    # Deterministic init mimicking nn.Linear's uniform(-1/sqrt(inp), 1/sqrt(inp)).
    bound = 1.0 / jnp.sqrt(jnp.float32(inp))
    w = jax.random.uniform(kw, (k, inp), dtype=jnp.float32,
                           minval=-bound, maxval=bound)

    ref = (x @ w.T) @ w

    # 1) Default (Gram) path, forced through the Pallas kernel.
    out = jax.block_until_ready(bear_wwty(x, w, allow_fallback=False))
    assert out.shape == x.shape and out.dtype == x.dtype
    assert jnp.allclose(out, ref, atol=2e-2, rtol=2e-2), "gram path mismatch"

    # 2) Two-matmul path, forced (covers the large-inp code path).
    out2 = jax.block_until_ready(
        bear_wwty(x, w, allow_fallback=False, use_gram=False))
    assert jnp.allclose(out2, ref, atol=2e-2, rtol=2e-2), "two-matmul mismatch"

    # 3) Larger, non-2D batch exercising tile balancing and a >=2-step grid.
    xb = jax.random.normal(kb, (3, 200, inp), dtype=jnp.float32)
    outb = jax.block_until_ready(bear_wwty(xb, w, allow_fallback=False))
    refb = (xb @ w.T) @ w
    assert outb.shape == xb.shape
    assert jnp.allclose(outb, refb, atol=2e-2, rtol=2e-2), "batched mismatch"

    print("KERNEL_OK")
</pallas_src>

<mosaic_0001>
module attributes {stable_mosaic.version = 11 : i64} {
  func.func @_gram_kernel(%arg0: i32, %arg1: memref<16x32xf32, #tpu.memory_space<vmem>>, %arg2: memref<32x32xbf16, #tpu.memory_space<vmem>>, %arg3: memref<16x32xf32, #tpu.memory_space<vmem>>) attributes {dimension_semantics = [#tpu.dimension_semantics<parallel>], iteration_bounds = array<i64: 1>, scalar_prefetch = 0 : i64, scratch_operands = 0 : i64, tpu.core_type = #tpu.core_type<tc>, window_params = [{transform_indices = @transform_0, window_bounds = array<i64: 16, 32>}, {pipeline_mode = #tpu.pipeline_mode<synchronous>, transform_indices = @transform_1, window_bounds = array<i64: 32, 32>}, {transform_indices = @transform_2, window_bounds = array<i64: 16, 32>}]} {
    %c0 = arith.constant 0 : index
    %c0_0 = arith.constant 0 : index
    %0 = vector.load %arg1[%c0, %c0_0] : memref<16x32xf32, #tpu.memory_space<vmem>>, vector<16x32xf32>
    %1 = arith.truncf %0 : vector<16x32xf32> to vector<16x32xbf16>
    %c0_1 = arith.constant 0 : index
    %c0_2 = arith.constant 0 : index
    %2 = vector.load %arg2[%c0_1, %c0_2] : memref<32x32xbf16, #tpu.memory_space<vmem>>, vector<32x32xbf16>
    %cst = arith.constant dense<0.000000e+00> : vector<16x32xf32>
    %3 = tpu.matmul %1, %2, %cst {dimension_numbers = #tpu.dot_dimension_numbers<[1], [0], [0], [1], [0, 0, 1, 1], [], []>} : vector<16x32xbf16>, vector<32x32xbf16>, vector<16x32xf32> -> vector<16x32xf32>
    %c0_3 = arith.constant 0 : index
    %c0_4 = arith.constant 0 : index
    %4 = vector.load %arg3[%c0_3, %c0_4] : memref<16x32xf32, #tpu.memory_space<vmem>>, vector<16x32xf32>
    tpu.vector_store %arg3[%c0_3, %c0_4], %3 {strides = array<i32>} : memref<16x32xf32, #tpu.memory_space<vmem>>, vector<16x32xf32>,
    return
  }
  func.func @transform_0(%arg0: i32) -> (i32, i32) {
    %c0_i32 = arith.constant 0 : i32
    %c0_i32_0 = arith.constant 0 : i32
    return %arg0, %c0_i32 : i32, i32
  }
  func.func @transform_1(%arg0: i32) -> (i32, i32) {
    %c0_i32 = arith.constant 0 : i32
    %c0_i32_0 = arith.constant 0 : i32
    %c0_i32_1 = arith.constant 0 : i32
    return %c0_i32, %c0_i32_0 : i32, i32
  }
  func.func @transform_2(%arg0: i32) -> (i32, i32) {
    %c0_i32 = arith.constant 0 : i32
    %c0_i32_0 = arith.constant 0 : i32
    return %arg0, %c0_i32 : i32, i32
  }
}

</mosaic_0001>

<llo_original>
// kernel: tpu_custom_call.1
$region0: #{tpu_custom_call.1}
  #allocation0 [shape = 'u32[]', space=smem, size = 0x4, offset = 0x4, fixed_abs, tag = 'smem constant byte address 0x4 - core index']
  #allocation1 [shape = 'u32[72,128]{1,0:T(1,128)}', space=vmem, size = 0x9000, scoped, tag = 'internal scratch']
  %s0 = inlined_call_operand.hbm [shape: f32[16,32], index: 0, kind: input, shape index: {}]
  %s1 = inlined_call_operand.hbm [shape: bf16[32,32], index: 1, kind: input, shape index: {}]
  %s2 = inlined_call_operand.hbm [shape: f32[16,32], index: 2, kind: output, shape index: {}]
  %s3 = sld [smem:[#allocation0]]
  $region26: #{tpu_custom_call.1} parent=0
    _
  %s5 = ssub.s32 1, %s3
  %s6 = scalar_select 0, %s5, %s3
  $region1: #{tpu_custom_call.1} parent=0
    #allocation2 [shape = 'u8[8192]{0}', space=vmem, size = 0x2000, scoped, tag = 'input window, operand 0, single buffered']
    #allocation3 [shape = 's32[1]{0}', space=sflag, size = 0x4, scoped, tag = 'scoped memory for tpu_custom_call.1']
    #allocation4 [shape = 's32[1]{0}', space=sflag, size = 0x4, scoped, tag = 'scoped memory for tpu_custom_call.1']
    #allocation5 [shape = 'u8[8192]{0}', space=vmem, size = 0x2000, scoped, tag = 'input window, operand 1, single buffered']
    #allocation6 [shape = 's32[1]{0}', space=sflag, size = 0x4, scoped, tag = 'scoped memory for tpu_custom_call.1']
    #allocation7 [shape = 'u8[8192]{0}', space=vmem, size = 0x2000, scoped, tag = 'output window, operand 0, single buffered']
    %7 = vsyncpa [#allocation3], 0
    %8 = vsyncpa [#allocation6], 0
    %9 = vsyncpa [#allocation4], 0
    // Predicated region
    $region2: #{tpu_custom_call.1} parent=1 // pred_check
      _
    $region3: #{tpu_custom_call.1} parent=1 // pred_check_branch
      %11 = sbr.rel (0) target = $region5
    $region4: #{tpu_custom_call.1} parent=1 // pred_region
      %13 = vsyncadd [#allocation3], 0
      %s14 = sshll.u32 %s0, 4
      %s15 = int_to_ptr.hbm [resolvable:$true] %s14
      %s16 = sshll.u32 [#allocation2], 4
      %s17 = int_to_ptr.vmem [resolvable:$true] %s16
      %22 = dma.hbm_to_vmem [thread:$0]  %s15, 256, %s17, [#allocation3], 128, 128, 8
    $region5: #{tpu_custom_call.1} parent=1 // pred_fallthru
      _
    // Predicated region
    $region6: #{tpu_custom_call.1} parent=1 // pred_check
      _
    $region7: #{tpu_custom_call.1} parent=1 // pred_check_branch
      %24 = sbr.rel (0) target = $region9
    $region8: #{tpu_custom_call.1} parent=1 // pred_region
      %26 = vsyncadd [#allocation6], 0
      %s27 = sshll.u32 %s1, 4
      %s28 = int_to_ptr.hbm [resolvable:$true] %s27
      %s29 = sshll.u32 [#allocation5], 4
      %s30 = int_to_ptr.vmem [resolvable:$true] %s29
      %35 = dma.hbm_to_vmem [thread:$0]  %s28, 256, %s30, [#allocation6], 64, 64, 4
    $region9: #{tpu_custom_call.1} parent=1 // pred_fallthru
      _
    // Predicated region
    $region10: #{tpu_custom_call.1} parent=1 // pred_check
      _
    $region11: #{tpu_custom_call.1} parent=1 // pred_check_branch
      %37 = sbr.rel (0) target = $region13
    $region12: #{tpu_custom_call.1} parent=1 // pred_region
      %39 = dma.done [#allocation3], 256
    $region13: #{tpu_custom_call.1} parent=1 // pred_fallthru
      _
    // Predicated region
    $region14: #{tpu_custom_call.1} parent=1 // pred_check
      _
    $region15: #{tpu_custom_call.1} parent=1 // pred_check_branch
      %41 = sbr.rel (0) target = $region17
    $region16: #{tpu_custom_call.1} parent=1 // pred_region
      %43 = dma.done [#allocation6], 256
    $region17: #{tpu_custom_call.1} parent=1 // pred_fallthru
      _
    %v45 = vld [vmem:[#allocation2] sm:$0xff]
    %v46 = vld [vmem:[#allocation2 + $0x8] sm:$0xff]
    %v47 = vpack.c.bf16 %v46, %v45
    %v48 = vld [vmem:[#allocation5] sm:$0xf]
    %v49 = vld [vmem:[#allocation5 + $0x4] sm:$0xf]
    %v50 = vld [vmem:[#allocation5 + $0x8] sm:$0xf]
    %v51 = vld [vmem:[#allocation5 + $0xc] sm:$0xf]
    %v56 = vunpack.c.l.b16 %v48
    %v57 = vunpack.c.l.b16 %v49
    %v58 = vunpack.c.l.b16 %v50
    %v59 = vunpack.c.l.b16 %v51
    %v60 = vpack.c.b16 %v57, %v56
    %v61 = vpack.c.b16 %v59, %v58
    %vm64 = vcmask 261120
    %v66 = vsel %vm64, %v47, 0
    %68 = vmatpush.bf16.msra.mxu0 0
    %69 = vmatpush.bf16.msra.mxu0 0
    %70 = vmatpush.bf16.msra.mxu0 0
    %71 = vmatpush.bf16.msra.mxu0 0
    %72 = vmatpush.bf16.msra.mxu0 0
    %73 = vmatpush.bf16.msra.mxu0 0
    %74 = vmatpush.bf16.msra.mxu0 %v61
    %75 = vmatpush.bf16.msra.mxu0 %v60
    %76 = vmatmul.bf16.gmra.mxu0 %v66
    %v77 = vpop.f32.mrf.mxu0
    %v78 = vadd.f32 0.0, %v77
    %v79 = vpop.f32.mrf.mxu0
    %v80 = vadd.f32 0.0, %v79
    %81 = vdwg.mxu0
    %82 = vst.msk [vmem:[#allocation7] sm:$0xff] %vm64, %v78
    %83 = vst.msk [vmem:[#allocation7 + $0x8] sm:$0xff] %vm64, %v80
    // Predicated region
    $region18: #{tpu_custom_call.1} parent=1 // pred_check
      _
    $region19: #{tpu_custom_call.1} parent=1 // pred_check_branch
      %85 = sbr.rel (0) target = $region21
    $region20: #{tpu_custom_call.1} parent=1 // pred_region
      %87 = vsyncadd [#allocation4], 0
      %s88 = sshll.u32 [#allocation7], 4
      %s89 = int_to_ptr.vmem [resolvable:$true] %s88
      %s90 = sshll.u32 %s2, 4
      %s91 = int_to_ptr.hbm [resolvable:$true] %s90
      %96 = dma.vmem_to_hbm [thread:$0]  %s89, 256, %s91, [#allocation4], 128, 128, 8
    $region21: #{tpu_custom_call.1} parent=1 // pred_fallthru
      _
    // Predicated region
    $region22: #{tpu_custom_call.1} parent=1 // pred_check
      _
    $region23: #{tpu_custom_call.1} parent=1 // pred_check_branch
      %98 = sbr.rel (0) target = $region25
    $region24: #{tpu_custom_call.1} parent=1 // pred_region
      %100 = dma.done [#allocation4], 256
    $region25: #{tpu_custom_call.1} parent=1 // pred_fallthru
      _
    %101 = vsyncpa [#allocation3], 1
    %102 = vsyncpa [#allocation6], 1
    %103 = vsyncpa [#allocation4], 1

</llo_original>
